<compile_context>
chip_gen: v6e
topology: v6e:2x2x1
jax: 0.10.0
libtpu: 0.0.40
codegen_flags: <defaults>
</compile_context>

<pallas_src>
import functools

import jax
import jax.numpy as jnp
from jax.experimental import pallas as pl
from jax.experimental.pallas import tpu as pltpu

EPS = 1e-14
LANE = 128


def _fast_recip(x):
    """1/x via EUP approx reciprocal + one Newton step (~f32-accurate)."""
    r = pl.reciprocal(x, approx=True)
    return r * (2.0 - x * r)


def _cheb_interp_kernel(nodes_ref, w_ref, v_ref, x_ref, o_ref, *,
                        num_points, strip_rows, num_strips):
    """One (tile_rows, 128) block of eval points, processed in sublane strips.

    nodes_ref / w_ref / v_ref : (N,) f32 in SMEM, read as scalars.
    x_ref / o_ref             : (tile_rows, 128) f32 in VMEM.
    """

    @pl.loop(0, num_strips)
    def _strip(s):
        start = pl.multiple_of(s * strip_rows, strip_rows)
        x = x_ref[pl.ds(start, strip_rows), :]               # (strip, 128)

        num = jnp.zeros_like(x)          # sum_n v[n]*w[n] / (x - node[n])
        den = jnp.zeros_like(x)          # sum_n       w[n] / (x - node[n])
        match_val = jnp.zeros_like(x)    # values[n] at an exact node hit
        matched = jnp.zeros(x.shape, dtype=jnp.bool_)

        # Static unroll over the (small) node count; SMEM scalars broadcast on
        # the VPU.  The per-node v*w product is a scalar op (scalar slot, free).
        for n in range(num_points):
            node_n = nodes_ref[n]
            w_n = w_ref[n]
            v_n = v_ref[n]
            vw_n = v_n * w_n

            d = x - node_n
            small = jnp.abs(d) < EPS
            inv = _fast_recip(jnp.where(small, 1.0, d))       # finite everywhere

            num = num + vw_n * inv
            den = den + w_n * inv
            matched = matched | small
            match_val = jnp.where(small, v_n, match_val)

        # torch semantics: lanes with an exact node match return values[match].
        o_ref[pl.ds(start, strip_rows), :] = jnp.where(
            matched, match_val, num * _fast_recip(den))


def cheb_interpolate(x_eval, values, nodes, weights, *, tile_rows=512):
    """Pallas forward pass: barycentric interpolation of `values` (at `nodes`,
    with barycentric `weights`) evaluated at `x_eval`.  Matches
    LagrangeInterpolationModel._cheb_interpolate."""
    assert tile_rows >= 8 and tile_rows % 8 == 0, \
        "tile_rows must be a positive multiple of 8 sublanes"
    x_eval = jnp.asarray(x_eval, jnp.float32)
    (M,) = x_eval.shape
    if M == 0:                                  # guard: empty eval set
        return jnp.zeros((0,), jnp.float32)
    N = int(nodes.shape[0])

    # Pad only to a whole number of 128-lane rows (needed for the lane-dense
    # 2-D reshape).  Partial *row blocks* at the end of the grid are handled by
    # the pipeline's boundary masking, so no further padding copy is needed.
    m_pad = ((M + LANE - 1) // LANE) * LANE
    pad = m_pad - M
    if pad:
        x_eval_p = jnp.concatenate(
            [x_eval, jnp.full((pad,), x_eval[0], jnp.float32)])
    else:
        x_eval_p = x_eval
    rows = m_pad // LANE
    x2 = x_eval_p.reshape(rows, LANE)           # lane- and sublane-dense slab

    # Block-size selection:
    #  * never larger than the slab,
    #  * if the whole slab would be one block but is big enough, split it into
    #    two comparable blocks so both v7x TensorCores get work,
    #  * cap at tile_rows (default 512 rows = 256 KiB per block).
    tr = min(tile_rows, rows)
    if tr == rows and rows >= 16:
        tr = -(-rows // 2)                      # ceil(rows / 2)
        tr = ((tr + 7) // 8) * 8                # keep (8,128) divisibility
        tr = min(tr, rows)
    # Strip size for register-resident accumulation inside the kernel.
    if tr % 32 == 0:
        strip = 32
    elif tr % 8 == 0:
        strip = 8
    else:
        strip = tr                              # tr == rows (full dim) case
    num_strips = tr // strip
    grid = -(-rows // tr)                       # ceil(rows / tr)

    nodes1 = nodes.astype(jnp.float32)
    w1 = weights.astype(jnp.float32)
    v1 = values.astype(jnp.float32)

    kernel = functools.partial(
        _cheb_interp_kernel,
        num_points=N, strip_rows=strip, num_strips=num_strips)

    cost = pl.CostEstimate(
        flops=m_pad * N * 12 + m_pad * 6,
        transcendentals=m_pad * (N + 1),
        bytes_accessed=8 * m_pad + 12 * N,
    )

    out = pl.pallas_call(
        kernel,
        out_shape=jax.ShapeDtypeStruct((rows, LANE), jnp.float32),
        grid_spec=pltpu.PrefetchScalarGridSpec(
            num_scalar_prefetch=0,
            grid=(grid,),
            in_specs=[
                pl.BlockSpec(memory_space=pltpu.MemorySpace.SMEM),  # nodes  (N,)
                pl.BlockSpec(memory_space=pltpu.MemorySpace.SMEM),  # weights(N,)
                pl.BlockSpec(memory_space=pltpu.MemorySpace.SMEM),  # values (N,)
                pl.BlockSpec((tr, LANE), lambda i: (i, 0)),         # x row-block
            ],
            out_specs=pl.BlockSpec((tr, LANE), lambda i: (i, 0)),
        ),
        compiler_params=pltpu.CompilerParams(
            dimension_semantics=("parallel",)),
        cost_estimate=cost,
    )(nodes1, w1, v1, x2)

    return out.reshape(m_pad)[:M]


def make_model_params(num_points, key):
    """Replicates LagrangeInterpolationModel.__init__ (values randomized
    deterministically instead of zeros so the output is non-trivial)."""
    i = jnp.linspace(0.0, 1.0, num_points, dtype=jnp.float32)
    nodes = jnp.cos(jnp.pi * i)
    weights = jnp.where(jnp.arange(num_points) % 2 == 0, 1.0, -1.0).astype(jnp.float32)
    weights = weights.at[0].set(0.5).at[-1].set(weights[-1] * 0.5)
    values = jax.random.normal(key, (num_points,), dtype=jnp.float32)
    return nodes, weights, values


def cheb_interpolate_ref(x_eval, values, nodes, weights):
    """Pure-JAX reference mirroring the torch code (exact divisions)."""
    d = x_eval[None, :] - nodes[:, None]
    small = jnp.abs(d) < EPS
    small_max = jnp.any(small, axis=0)
    d = jnp.where(small_max[None, :], jnp.zeros_like(d), 1.0 / d)
    d = jnp.where(small, jnp.ones_like(d), d)
    num = jnp.einsum("n,nm,n->m", values, d, weights)
    den = jnp.einsum("nm,n->m", d, weights)
    return num / den


if __name__ == "__main__":
    key = jax.random.PRNGKey(0)

    # (num_points, num_eval): small case matches the spec's linspace(-1,1,1000);
    # the larger case exercises multi-step grids, the strip loop and a partial
    # final row-block.
    configs = [(8, 1000), (9, 1000), (9, 70_000)]

    for cfg, (num_points, m_eval) in enumerate(configs):
        k_vals = jax.random.fold_in(key, cfg)
        nodes, weights, values = make_model_params(num_points, k_vals)

        x_eval = jnp.linspace(-1.0, 1.0, m_eval, dtype=jnp.float32)
        # Force the exact-node-match branch on a few lanes.
        x_eval = x_eval.at[1].set(nodes[0]).at[2].set(nodes[num_points // 2])

        out = cheb_interpolate(x_eval, values, nodes, weights)
        out = jax.block_until_ready(out)

        ref = cheb_interpolate_ref(x_eval, values, nodes, weights)
        assert out.shape == (m_eval,) and out.dtype == jnp.float32
        err = float(jnp.max(jnp.abs(out - ref)))
        assert bool(jnp.allclose(out, ref, rtol=1e-5, atol=1e-5)), \
            f"num_points={num_points}, M={m_eval}: max err {err}"

    print("KERNEL_OK")
</pallas_src>

<mosaic_0001>
module attributes {stable_mosaic.version = 11 : i64} {
  func.func @_cheb_interp_kernel(%arg0: i32, %arg1: memref<8xf32, #tpu.memory_space<smem>>, %arg2: memref<8xf32, #tpu.memory_space<smem>>, %arg3: memref<8xf32, #tpu.memory_space<smem>>, %arg4: memref<8x128xf32, #tpu.memory_space<vmem>>, %arg5: memref<8x128xf32, #tpu.memory_space<vmem>>) attributes {dimension_semantics = [#tpu.dimension_semantics<parallel>], iteration_bounds = array<i64: 1>, scalar_prefetch = 0 : i64, scratch_operands = 0 : i64, tpu.core_type = #tpu.core_type<tc>, window_params = [{transform_indices = @transform_0, window_bounds = array<i64: 8>}, {transform_indices = @transform_1, window_bounds = array<i64: 8>}, {transform_indices = @transform_2, window_bounds = array<i64: 8>}, {transform_indices = @transform_3, window_bounds = array<i64: 8, 128>}, {transform_indices = @transform_4, window_bounds = array<i64: 8, 128>}]} {
    %c0_i32 = arith.constant 0 : i32
    %c1_i32 = arith.constant 1 : i32
    %0 = arith.muli %c0_i32, %c1_i32 : i32
    %c0_i32_0 = arith.constant 0 : i32
    %1 = arith.addi %c0_i32_0, %0 : i32
    %c8_i32 = arith.constant 8 : i32
    %2 = arith.muli %1, %c8_i32 : i32
    %3 = tpu.assume_multiple %2, 8 : i32
    %4 = arith.index_cast %3 : i32 to index
    %c0 = arith.constant 0 : index
    %5 = vector.load %arg4[%4, %c0] : memref<8x128xf32, #tpu.memory_space<vmem>>, vector<8x128xf32>
    %cst = arith.constant 0.000000e+00 : f32
    %6 = vector.broadcast %cst : f32 to vector<8x128xf32>
    %cst_1 = arith.constant 0.000000e+00 : f32
    %7 = vector.broadcast %cst_1 : f32 to vector<8x128xf32>
    %cst_2 = arith.constant 0.000000e+00 : f32
    %8 = vector.broadcast %cst_2 : f32 to vector<8x128xf32>
    %false = arith.constant false
    %9 = vector.broadcast %false : i1 to vector<8x128xi1>
    %c0_3 = arith.constant 0 : index
    %10 = memref.load %arg1[%c0_3] : memref<8xf32, #tpu.memory_space<smem>>
    %c0_4 = arith.constant 0 : index
    %11 = memref.load %arg2[%c0_4] : memref<8xf32, #tpu.memory_space<smem>>
    %c0_5 = arith.constant 0 : index
    %12 = memref.load %arg3[%c0_5] : memref<8xf32, #tpu.memory_space<smem>>
    %13 = arith.mulf %12, %11 : f32
    %14 = vector.broadcast %10 : f32 to vector<8x128xf32>
    %15 = arith.subf %5, %14 : vector<8x128xf32>
    %16 = math.absf %15 : vector<8x128xf32>
    %cst_6 = arith.constant 9.99999982E-15 : f32
    %17 = vector.broadcast %cst_6 : f32 to vector<8x128xf32>
    %18 = arith.cmpf olt, %16, %17 : vector<8x128xf32>
    %cst_7 = arith.constant 1.000000e+00 : f32
    %19 = vector.broadcast %cst_7 : f32 to vector<8x128xf32>
    %20 = arith.select %18, %19, %15 : vector<8x128xi1>, vector<8x128xf32>
    %21 = tpu.reciprocal %20 {approx = true} : vector<8x128xf32> -> vector<8x128xf32>
    %22 = arith.mulf %20, %21 : vector<8x128xf32>
    %cst_8 = arith.constant 2.000000e+00 : f32
    %23 = vector.broadcast %cst_8 : f32 to vector<8x128xf32>
    %24 = arith.subf %23, %22 : vector<8x128xf32>
    %25 = arith.mulf %21, %24 : vector<8x128xf32>
    %26 = vector.broadcast %13 : f32 to vector<8x128xf32>
    %27 = arith.mulf %26, %25 : vector<8x128xf32>
    %28 = arith.addf %6, %27 : vector<8x128xf32>
    %29 = vector.broadcast %11 : f32 to vector<8x128xf32>
    %30 = arith.mulf %29, %25 : vector<8x128xf32>
    %31 = arith.addf %7, %30 : vector<8x128xf32>
    %32 = arith.ori %9, %18 : vector<8x128xi1>
    %33 = vector.broadcast %12 : f32 to vector<8x128xf32>
    %34 = arith.select %18, %33, %8 : vector<8x128xi1>, vector<8x128xf32>
    %c1 = arith.constant 1 : index
    %35 = memref.load %arg1[%c1] : memref<8xf32, #tpu.memory_space<smem>>
    %c1_9 = arith.constant 1 : index
    %36 = memref.load %arg2[%c1_9] : memref<8xf32, #tpu.memory_space<smem>>
    %c1_10 = arith.constant 1 : index
    %37 = memref.load %arg3[%c1_10] : memref<8xf32, #tpu.memory_space<smem>>
    %38 = arith.mulf %37, %36 : f32
    %39 = vector.broadcast %35 : f32 to vector<8x128xf32>
    %40 = arith.subf %5, %39 : vector<8x128xf32>
    %41 = math.absf %40 : vector<8x128xf32>
    %cst_11 = arith.constant 9.99999982E-15 : f32
    %42 = vector.broadcast %cst_11 : f32 to vector<8x128xf32>
    %43 = arith.cmpf olt, %41, %42 : vector<8x128xf32>
    %cst_12 = arith.constant 1.000000e+00 : f32
    %44 = vector.broadcast %cst_12 : f32 to vector<8x128xf32>
    %45 = arith.select %43, %44, %40 : vector<8x128xi1>, vector<8x128xf32>
    %46 = tpu.reciprocal %45 {approx = true} : vector<8x128xf32> -> vector<8x128xf32>
    %47 = arith.mulf %45, %46 : vector<8x128xf32>
    %cst_13 = arith.constant 2.000000e+00 : f32
    %48 = vector.broadcast %cst_13 : f32 to vector<8x128xf32>
    %49 = arith.subf %48, %47 : vector<8x128xf32>
    %50 = arith.mulf %46, %49 : vector<8x128xf32>
    %51 = vector.broadcast %38 : f32 to vector<8x128xf32>
    %52 = arith.mulf %51, %50 : vector<8x128xf32>
    %53 = arith.addf %28, %52 : vector<8x128xf32>
    %54 = vector.broadcast %36 : f32 to vector<8x128xf32>
    %55 = arith.mulf %54, %50 : vector<8x128xf32>
    %56 = arith.addf %31, %55 : vector<8x128xf32>
    %57 = arith.ori %32, %43 : vector<8x128xi1>
    %58 = vector.broadcast %37 : f32 to vector<8x128xf32>
    %59 = arith.select %43, %58, %34 : vector<8x128xi1>, vector<8x128xf32>
    %c2 = arith.constant 2 : index
    %60 = memref.load %arg1[%c2] : memref<8xf32, #tpu.memory_space<smem>>
    %c2_14 = arith.constant 2 : index
    %61 = memref.load %arg2[%c2_14] : memref<8xf32, #tpu.memory_space<smem>>
    %c2_15 = arith.constant 2 : index
    %62 = memref.load %arg3[%c2_15] : memref<8xf32, #tpu.memory_space<smem>>
    %63 = arith.mulf %62, %61 : f32
    %64 = vector.broadcast %60 : f32 to vector<8x128xf32>
    %65 = arith.subf %5, %64 : vector<8x128xf32>
    %66 = math.absf %65 : vector<8x128xf32>
    %cst_16 = arith.constant 9.99999982E-15 : f32
    %67 = vector.broadcast %cst_16 : f32 to vector<8x128xf32>
    %68 = arith.cmpf olt, %66, %67 : vector<8x128xf32>
    %cst_17 = arith.constant 1.000000e+00 : f32
    %69 = vector.broadcast %cst_17 : f32 to vector<8x128xf32>
    %70 = arith.select %68, %69, %65 : vector<8x128xi1>, vector<8x128xf32>
    %71 = tpu.reciprocal %70 {approx = true} : vector<8x128xf32> -> vector<8x128xf32>
    %72 = arith.mulf %70, %71 : vector<8x128xf32>
    %cst_18 = arith.constant 2.000000e+00 : f32
    %73 = vector.broadcast %cst_18 : f32 to vector<8x128xf32>
    %74 = arith.subf %73, %72 : vector<8x128xf32>
    %75 = arith.mulf %71, %74 : vector<8x128xf32>
    %76 = vector.broadcast %63 : f32 to vector<8x128xf32>
    %77 = arith.mulf %76, %75 : vector<8x128xf32>
    %78 = arith.addf %53, %77 : vector<8x128xf32>
    %79 = vector.broadcast %61 : f32 to vector<8x128xf32>
    %80 = arith.mulf %79, %75 : vector<8x128xf32>
    %81 = arith.addf %56, %80 : vector<8x128xf32>
    %82 = arith.ori %57, %68 : vector<8x128xi1>
    %83 = vector.broadcast %62 : f32 to vector<8x128xf32>
    %84 = arith.select %68, %83, %59 : vector<8x128xi1>, vector<8x128xf32>
    %c3 = arith.constant 3 : index
    %85 = memref.load %arg1[%c3] : memref<8xf32, #tpu.memory_space<smem>>
    %c3_19 = arith.constant 3 : index
    %86 = memref.load %arg2[%c3_19] : memref<8xf32, #tpu.memory_space<smem>>
    %c3_20 = arith.constant 3 : index
    %87 = memref.load %arg3[%c3_20] : memref<8xf32, #tpu.memory_space<smem>>
    %88 = arith.mulf %87, %86 : f32
    %89 = vector.broadcast %85 : f32 to vector<8x128xf32>
    %90 = arith.subf %5, %89 : vector<8x128xf32>
    %91 = math.absf %90 : vector<8x128xf32>
    %cst_21 = arith.constant 9.99999982E-15 : f32
    %92 = vector.broadcast %cst_21 : f32 to vector<8x128xf32>
    %93 = arith.cmpf olt, %91, %92 : vector<8x128xf32>
    %cst_22 = arith.constant 1.000000e+00 : f32
    %94 = vector.broadcast %cst_22 : f32 to vector<8x128xf32>
    %95 = arith.select %93, %94, %90 : vector<8x128xi1>, vector<8x128xf32>
    %96 = tpu.reciprocal %95 {approx = true} : vector<8x128xf32> -> vector<8x128xf32>
    %97 = arith.mulf %95, %96 : vector<8x128xf32>
    %cst_23 = arith.constant 2.000000e+00 : f32
    %98 = vector.broadcast %cst_23 : f32 to vector<8x128xf32>
    %99 = arith.subf %98, %97 : vector<8x128xf32>
    %100 = arith.mulf %96, %99 : vector<8x128xf32>
    %101 = vector.broadcast %88 : f32 to vector<8x128xf32>
    %102 = arith.mulf %101, %100 : vector<8x128xf32>
    %103 = arith.addf %78, %102 : vector<8x128xf32>
    %104 = vector.broadcast %86 : f32 to vector<8x128xf32>
    %105 = arith.mulf %104, %100 : vector<8x128xf32>
    %106 = arith.addf %81, %105 : vector<8x128xf32>
    %107 = arith.ori %82, %93 : vector<8x128xi1>
    %108 = vector.broadcast %87 : f32 to vector<8x128xf32>
    %109 = arith.select %93, %108, %84 : vector<8x128xi1>, vector<8x128xf32>
    %c4 = arith.constant 4 : index
    %110 = memref.load %arg1[%c4] : memref<8xf32, #tpu.memory_space<smem>>
    %c4_24 = arith.constant 4 : index
    %111 = memref.load %arg2[%c4_24] : memref<8xf32, #tpu.memory_space<smem>>
    %c4_25 = arith.constant 4 : index
    %112 = memref.load %arg3[%c4_25] : memref<8xf32, #tpu.memory_space<smem>>
    %113 = arith.mulf %112, %111 : f32
    %114 = vector.broadcast %110 : f32 to vector<8x128xf32>
    %115 = arith.subf %5, %114 : vector<8x128xf32>
    %116 = math.absf %115 : vector<8x128xf32>
    %cst_26 = arith.constant 9.99999982E-15 : f32
    %117 = vector.broadcast %cst_26 : f32 to vector<8x128xf32>
    %118 = arith.cmpf olt, %116, %117 : vector<8x128xf32>
    %cst_27 = arith.constant 1.000000e+00 : f32
    %119 = vector.broadcast %cst_27 : f32 to vector<8x128xf32>
    %120 = arith.select %118, %119, %115 : vector<8x128xi1>, vector<8x128xf32>
    %121 = tpu.reciprocal %120 {approx = true} : vector<8x128xf32> -> vector<8x128xf32>
    %122 = arith.mulf %120, %121 : vector<8x128xf32>
    %cst_28 = arith.constant 2.000000e+00 : f32
    %123 = vector.broadcast %cst_28 : f32 to vector<8x128xf32>
    %124 = arith.subf %123, %122 : vector<8x128xf32>
    %125 = arith.mulf %121, %124 : vector<8x128xf32>
    %126 = vector.broadcast %113 : f32 to vector<8x128xf32>
    %127 = arith.mulf %126, %125 : vector<8x128xf32>
    %128 = arith.addf %103, %127 : vector<8x128xf32>
    %129 = vector.broadcast %111 : f32 to vector<8x128xf32>
    %130 = arith.mulf %129, %125 : vector<8x128xf32>
    %131 = arith.addf %106, %130 : vector<8x128xf32>
    %132 = arith.ori %107, %118 : vector<8x128xi1>
    %133 = vector.broadcast %112 : f32 to vector<8x128xf32>
    %134 = arith.select %118, %133, %109 : vector<8x128xi1>, vector<8x128xf32>
    %c5 = arith.constant 5 : index
    %135 = memref.load %arg1[%c5] : memref<8xf32, #tpu.memory_space<smem>>
    %c5_29 = arith.constant 5 : index
    %136 = memref.load %arg2[%c5_29] : memref<8xf32, #tpu.memory_space<smem>>
    %c5_30 = arith.constant 5 : index
    %137 = memref.load %arg3[%c5_30] : memref<8xf32, #tpu.memory_space<smem>>
    %138 = arith.mulf %137, %136 : f32
    %139 = vector.broadcast %135 : f32 to vector<8x128xf32>
    %140 = arith.subf %5, %139 : vector<8x128xf32>
    %141 = math.absf %140 : vector<8x128xf32>
    %cst_31 = arith.constant 9.99999982E-15 : f32
    %142 = vector.broadcast %cst_31 : f32 to vector<8x128xf32>
    %143 = arith.cmpf olt, %141, %142 : vector<8x128xf32>
    %cst_32 = arith.constant 1.000000e+00 : f32
    %144 = vector.broadcast %cst_32 : f32 to vector<8x128xf32>
    %145 = arith.select %143, %144, %140 : vector<8x128xi1>, vector<8x128xf32>
    %146 = tpu.reciprocal %145 {approx = true} : vector<8x128xf32> -> vector<8x128xf32>
    %147 = arith.mulf %145, %146 : vector<8x128xf32>
    %cst_33 = arith.constant 2.000000e+00 : f32
    %148 = vector.broadcast %cst_33 : f32 to vector<8x128xf32>
    %149 = arith.subf %148, %147 : vector<8x128xf32>
    %150 = arith.mulf %146, %149 : vector<8x128xf32>
    %151 = vector.broadcast %138 : f32 to vector<8x128xf32>
    %152 = arith.mulf %151, %150 : vector<8x128xf32>
    %153 = arith.addf %128, %152 : vector<8x128xf32>
    %154 = vector.broadcast %136 : f32 to vector<8x128xf32>
    %155 = arith.mulf %154, %150 : vector<8x128xf32>
    %156 = arith.addf %131, %155 : vector<8x128xf32>
    %157 = arith.ori %132, %143 : vector<8x128xi1>
    %158 = vector.broadcast %137 : f32 to vector<8x128xf32>
    %159 = arith.select %143, %158, %134 : vector<8x128xi1>, vector<8x128xf32>
    %c6 = arith.constant 6 : index
    %160 = memref.load %arg1[%c6] : memref<8xf32, #tpu.memory_space<smem>>
    %c6_34 = arith.constant 6 : index
    %161 = memref.load %arg2[%c6_34] : memref<8xf32, #tpu.memory_space<smem>>
    %c6_35 = arith.constant 6 : index
    %162 = memref.load %arg3[%c6_35] : memref<8xf32, #tpu.memory_space<smem>>
    %163 = arith.mulf %162, %161 : f32
    %164 = vector.broadcast %160 : f32 to vector<8x128xf32>
    %165 = arith.subf %5, %164 : vector<8x128xf32>
    %166 = math.absf %165 : vector<8x128xf32>
    %cst_36 = arith.constant 9.99999982E-15 : f32
    %167 = vector.broadcast %cst_36 : f32 to vector<8x128xf32>
    %168 = arith.cmpf olt, %166, %167 : vector<8x128xf32>
    %cst_37 = arith.constant 1.000000e+00 : f32
    %169 = vector.broadcast %cst_37 : f32 to vector<8x128xf32>
    %170 = arith.select %168, %169, %165 : vector<8x128xi1>, vector<8x128xf32>
    %171 = tpu.reciprocal %170 {approx = true} : vector<8x128xf32> -> vector<8x128xf32>
    %172 = arith.mulf %170, %171 : vector<8x128xf32>
    %cst_38 = arith.constant 2.000000e+00 : f32
    %173 = vector.broadcast %cst_38 : f32 to vector<8x128xf32>
    %174 = arith.subf %173, %172 : vector<8x128xf32>
    %175 = arith.mulf %171, %174 : vector<8x128xf32>
    %176 = vector.broadcast %163 : f32 to vector<8x128xf32>
    %177 = arith.mulf %176, %175 : vector<8x128xf32>
    %178 = arith.addf %153, %177 : vector<8x128xf32>
    %179 = vector.broadcast %161 : f32 to vector<8x128xf32>
    %180 = arith.mulf %179, %175 : vector<8x128xf32>
    %181 = arith.addf %156, %180 : vector<8x128xf32>
    %182 = arith.ori %157, %168 : vector<8x128xi1>
    %183 = vector.broadcast %162 : f32 to vector<8x128xf32>
    %184 = arith.select %168, %183, %159 : vector<8x128xi1>, vector<8x128xf32>
    %c7 = arith.constant 7 : index
    %185 = memref.load %arg1[%c7] : memref<8xf32, #tpu.memory_space<smem>>
    %c7_39 = arith.constant 7 : index
    %186 = memref.load %arg2[%c7_39] : memref<8xf32, #tpu.memory_space<smem>>
    %c7_40 = arith.constant 7 : index
    %187 = memref.load %arg3[%c7_40] : memref<8xf32, #tpu.memory_space<smem>>
    %188 = arith.mulf %187, %186 : f32
    %189 = vector.broadcast %185 : f32 to vector<8x128xf32>
    %190 = arith.subf %5, %189 : vector<8x128xf32>
    %191 = math.absf %190 : vector<8x128xf32>
    %cst_41 = arith.constant 9.99999982E-15 : f32
    %192 = vector.broadcast %cst_41 : f32 to vector<8x128xf32>
    %193 = arith.cmpf olt, %191, %192 : vector<8x128xf32>
    %cst_42 = arith.constant 1.000000e+00 : f32
    %194 = vector.broadcast %cst_42 : f32 to vector<8x128xf32>
    %195 = arith.select %193, %194, %190 : vector<8x128xi1>, vector<8x128xf32>
    %196 = tpu.reciprocal %195 {approx = true} : vector<8x128xf32> -> vector<8x128xf32>
    %197 = arith.mulf %195, %196 : vector<8x128xf32>
    %cst_43 = arith.constant 2.000000e+00 : f32
    %198 = vector.broadcast %cst_43 : f32 to vector<8x128xf32>
    %199 = arith.subf %198, %197 : vector<8x128xf32>
    %200 = arith.mulf %196, %199 : vector<8x128xf32>
    %201 = vector.broadcast %188 : f32 to vector<8x128xf32>
    %202 = arith.mulf %201, %200 : vector<8x128xf32>
    %203 = arith.addf %178, %202 : vector<8x128xf32>
    %204 = vector.broadcast %186 : f32 to vector<8x128xf32>
    %205 = arith.mulf %204, %200 : vector<8x128xf32>
    %206 = arith.addf %181, %205 : vector<8x128xf32>
    %207 = arith.ori %182, %193 : vector<8x128xi1>
    %208 = vector.broadcast %187 : f32 to vector<8x128xf32>
    %209 = arith.select %193, %208, %184 : vector<8x128xi1>, vector<8x128xf32>
    %210 = tpu.reciprocal %206 {approx = true} : vector<8x128xf32> -> vector<8x128xf32>
    %211 = arith.mulf %206, %210 : vector<8x128xf32>
    %cst_44 = arith.constant 2.000000e+00 : f32
    %212 = vector.broadcast %cst_44 : f32 to vector<8x128xf32>
    %213 = arith.subf %212, %211 : vector<8x128xf32>
    %214 = arith.mulf %210, %213 : vector<8x128xf32>
    %215 = arith.mulf %203, %214 : vector<8x128xf32>
    %216 = arith.select %207, %209, %215 : vector<8x128xi1>, vector<8x128xf32>
    %217 = arith.index_cast %3 : i32 to index
    %c0_45 = arith.constant 0 : index
    %218 = vector.load %arg5[%217, %c0_45] : memref<8x128xf32, #tpu.memory_space<vmem>>, vector<8x128xf32>
    tpu.vector_store %arg5[%217, %c0_45], %216 {strides = array<i32>} : memref<8x128xf32, #tpu.memory_space<vmem>>, vector<8x128xf32>,
    %c1_i32_46 = arith.constant 1 : i32
    return
  }
  func.func @transform_0(%arg0: i32) -> i32 {
    %c0_i32 = arith.constant 0 : i32
    %c0_i32_0 = arith.constant 0 : i32
    return %c0_i32 : i32
  }
  func.func @transform_1(%arg0: i32) -> i32 {
    %c0_i32 = arith.constant 0 : i32
    %c0_i32_0 = arith.constant 0 : i32
    return %c0_i32 : i32
  }
  func.func @transform_2(%arg0: i32) -> i32 {
    %c0_i32 = arith.constant 0 : i32
    %c0_i32_0 = arith.constant 0 : i32
    return %c0_i32 : i32
  }
  func.func @transform_3(%arg0: i32) -> (i32, i32) {
    %c0_i32 = arith.constant 0 : i32
    %c0_i32_0 = arith.constant 0 : i32
    return %arg0, %c0_i32 : i32, i32
  }
  func.func @transform_4(%arg0: i32) -> (i32, i32) {
    %c0_i32 = arith.constant 0 : i32
    %c0_i32_0 = arith.constant 0 : i32
    return %arg0, %c0_i32 : i32, i32
  }
}

</mosaic_0001>

<llo_original>
// kernel: tpu_custom_call.1
$region0: #{tpu_custom_call.1}
  #allocation0 [shape = 'u32[]', space=smem, size = 0x4, offset = 0x4, fixed_abs, tag = 'smem constant byte address 0x4 - core index']
  #allocation1 [shape = 'u32[144,128]{1,0:T(1,128)}', space=vmem, size = 0x12000, scoped, tag = 'internal scratch']
  %s0 = inlined_call_operand.hbm [shape: f32[8], index: 0, kind: input, shape index: {}]
  %s1 = inlined_call_operand.vmem [shape: f32[8], index: 1, kind: input, shape index: {}]
  %s2 = inlined_call_operand.vmem [shape: f32[8], index: 2, kind: input, shape index: {}]
  %s3 = inlined_call_operand.hbm [shape: f32[8,128], index: 3, kind: input, shape index: {}]
  %s4 = inlined_call_operand.hbm [shape: f32[8,128], index: 4, kind: output, shape index: {}]
  %s5 = sld [smem:[#allocation0]]
  $region42: #{tpu_custom_call.1} parent=0
    _
  %s7 = ssub.s32 1, %s5
  %s8 = scalar_select 0, %s7, %s5
  $region1: #{tpu_custom_call.1} parent=0
    #allocation2 [shape = 'u8[512]{0}', space=smem, size = 0x200, scoped, tag = 'input window, operand 0, single buffered']
    #allocation3 [shape = 's32[1]{0}', space=sflag, size = 0x4, scoped, tag = 'scoped memory for tpu_custom_call.1']
    #allocation4 [shape = 's32[1]{0}', space=sflag, size = 0x4, scoped, tag = 'scoped memory for tpu_custom_call.1']
    #allocation5 [shape = 's32[1]{0}', space=sflag, size = 0x4, scoped, tag = 'scoped memory for tpu_custom_call.1']
    #allocation6 [shape = 's32[1]{0}', space=sflag, size = 0x4, scoped, tag = 'scoped memory for tpu_custom_call.1']
    #allocation7 [shape = 'u8[512]{0}', space=smem, size = 0x200, scoped, tag = 'input window, operand 1, single buffered']
    #allocation8 [shape = 'u8[512]{0}', space=smem, size = 0x200, scoped, tag = 'input window, operand 2, single buffered']
    #allocation9 [shape = 's32[1]{0}', space=sflag, size = 0x4, scoped, tag = 'scoped memory for tpu_custom_call.1']
    #allocation10 [shape = 'u8[4096]{0}', space=vmem, size = 0x1000, scoped, tag = 'input window, operand 3, single buffered']
    #allocation11 [shape = 'u8[4096]{0}', space=vmem, size = 0x1000, scoped, tag = 'output window, operand 0, single buffered']
    %9 = vsyncpa [#allocation5], 0
    %10 = vsyncpa [#allocation6], 0
    %11 = vsyncpa [#allocation9], 0
    %12 = vsyncpa [#allocation3], 0
    %13 = vsyncpa [#allocation4], 0
    // Predicated region
    $region2: #{tpu_custom_call.1} parent=1 // pred_check
      _
    $region3: #{tpu_custom_call.1} parent=1 // pred_check_branch
      %15 = sbr.rel (0) target = $region5
    $region4: #{tpu_custom_call.1} parent=1 // pred_region
      %s17 = ssub.s32 16, 16
      %18 = vsyncadd [#allocation5], %s17
      %21 = dma.hbm_to_smem %s0, 16, [#allocation2], [#allocation5]
    $region5: #{tpu_custom_call.1} parent=1 // pred_fallthru
      _
    // Predicated region
    $region6: #{tpu_custom_call.1} parent=1 // pred_check
      _
    $region7: #{tpu_custom_call.1} parent=1 // pred_check_branch
      %23 = sbr.rel (0) target = $region9
    $region8: #{tpu_custom_call.1} parent=1 // pred_region
      %s25 = ssub.s32 16, 16
      %26 = vsyncadd [#allocation6], %s25
      %s28 = sshll.u32 %s1, 4
      %s29 = int_to_ptr.vmem [resolvable:$true] %s28
      %31 = dma.vmem_to_smem %s29, 16, [#allocation7], [#allocation6]
    $region9: #{tpu_custom_call.1} parent=1 // pred_fallthru
      _
    // Predicated region
    $region10: #{tpu_custom_call.1} parent=1 // pred_check
      _
    $region11: #{tpu_custom_call.1} parent=1 // pred_check_branch
      %33 = sbr.rel (0) target = $region13
    $region12: #{tpu_custom_call.1} parent=1 // pred_region
      %s35 = ssub.s32 16, 16
      %36 = vsyncadd [#allocation9], %s35
      %s38 = sshll.u32 %s2, 4
      %s39 = int_to_ptr.vmem [resolvable:$true] %s38
      %41 = dma.vmem_to_smem %s39, 16, [#allocation8], [#allocation9]
    $region13: #{tpu_custom_call.1} parent=1 // pred_fallthru
      _
    // Predicated region
    $region14: #{tpu_custom_call.1} parent=1 // pred_check
      _
    $region15: #{tpu_custom_call.1} parent=1 // pred_check_branch
      %43 = sbr.rel (0) target = $region17
    $region16: #{tpu_custom_call.1} parent=1 // pred_region
      %s45 = ssub.s32 128, 128
      %46 = vsyncadd [#allocation3], %s45
      %s48 = sshll.u32 [#allocation10], 4
      %s49 = int_to_ptr.vmem [resolvable:$true] %s48
      %51 = dma.hbm_to_vmem [thread:$0]  %s3, 128, %s49, [#allocation3]
    $region17: #{tpu_custom_call.1} parent=1 // pred_fallthru
      _
    // Predicated region
    $region18: #{tpu_custom_call.1} parent=1 // pred_check
      _
    $region19: #{tpu_custom_call.1} parent=1 // pred_check_branch
      %53 = sbr.rel (0) target = $region21
    $region20: #{tpu_custom_call.1} parent=1 // pred_region
      %54 = dma.done [#allocation5], 16
    $region21: #{tpu_custom_call.1} parent=1 // pred_fallthru
      _
    // Predicated region
    $region22: #{tpu_custom_call.1} parent=1 // pred_check
      _
    $region23: #{tpu_custom_call.1} parent=1 // pred_check_branch
      %56 = sbr.rel (0) target = $region25
    $region24: #{tpu_custom_call.1} parent=1 // pred_region
      %57 = dma.done [#allocation6], 16
    $region25: #{tpu_custom_call.1} parent=1 // pred_fallthru
      _
    // Predicated region
    $region26: #{tpu_custom_call.1} parent=1 // pred_check
      _
    $region27: #{tpu_custom_call.1} parent=1 // pred_check_branch
      %59 = sbr.rel (0) target = $region29
    $region28: #{tpu_custom_call.1} parent=1 // pred_region
      %60 = dma.done [#allocation9], 16
    $region29: #{tpu_custom_call.1} parent=1 // pred_fallthru
      _
    // Predicated region
    $region30: #{tpu_custom_call.1} parent=1 // pred_check
      _
    $region31: #{tpu_custom_call.1} parent=1 // pred_check_branch
      %62 = sbr.rel (0) target = $region33
    $region32: #{tpu_custom_call.1} parent=1 // pred_region
      %63 = dma.done [#allocation3], 128
    $region33: #{tpu_custom_call.1} parent=1 // pred_fallthru
      _
    %64 = sfence
    %v65 = vld [vmem:[#allocation10] sm:$0xff]
    %s66 = sld [smem:[#allocation2]]
    %s67 = sld [smem:[#allocation7]]
    %s68 = sld [smem:[#allocation8]]
    %s69 = smul.f32 %s68, %s67
    %v70 = vstv %s66
    %v71 = vsub.f32 %v65, %v70
    %v72 = vand.u32 2147483647, %v71
    %vm73 = vcmp.lt.f32.partialorder %v72, 1e-14
    %v74 = vsel %vm73, 1.0, %v71
    %v75 = vrcp.pop %v74
    %v76 = vmul.f32 %v74, %v75
    %v77 = vsub.f32 2.0, %v76
    %v78 = vmul.f32 %v75, %v77
    %v79 = vstv %s69
    %v80 = vmul.f32 %v79, %v78
    %v81 = vadd.f32 %v80, 0.0
    %v82 = vstv %s67
    %v83 = vmul.f32 %v82, %v78
    %v84 = vadd.f32 %v83, 0.0
    %v85 = vstv %s68
    %v86 = vsel %vm73, %v85, 0.0
    %s87 = sld [smem:[#allocation2 + $0x1]]
    %s88 = sld [smem:[#allocation7 + $0x1]]
    %s89 = sld [smem:[#allocation8 + $0x1]]
    %s90 = smul.f32 %s89, %s88
    %v91 = vstv %s87
    %v92 = vsub.f32 %v65, %v91
    %v93 = vand.u32 2147483647, %v92
    %vm94 = vcmp.lt.f32.partialorder %v93, 1e-14
    %v95 = vsel %vm94, 1.0, %v92
    %v96 = vrcp.pop %v95
    %v97 = vmul.f32 %v95, %v96
    %v98 = vsub.f32 2.0, %v97
    %v99 = vmul.f32 %v96, %v98
    %v100 = vstv %s90
    %v101 = vmul.f32 %v100, %v99
    %v102 = vadd.f32 %v81, %v101
    %v103 = vstv %s88
    %v104 = vmul.f32 %v103, %v99
    %v105 = vadd.f32 %v84, %v104
    %vm106 = vmor %vm73, %vm94
    %v107 = vstv %s89
    %v108 = vsel %vm94, %v107, %v86
    %s109 = sld [smem:[#allocation2 + $0x2]]
    %s110 = sld [smem:[#allocation7 + $0x2]]
    %s111 = sld [smem:[#allocation8 + $0x2]]
    %s112 = smul.f32 %s111, %s110
    %v113 = vstv %s109
    %v114 = vsub.f32 %v65, %v113
    %v115 = vand.u32 2147483647, %v114
    %vm116 = vcmp.lt.f32.partialorder %v115, 1e-14
    %v117 = vsel %vm116, 1.0, %v114
    %v118 = vrcp.pop %v117
    %v119 = vmul.f32 %v117, %v118
    %v120 = vsub.f32 2.0, %v119
    %v121 = vmul.f32 %v118, %v120
    %v122 = vstv %s112
    %v123 = vmul.f32 %v122, %v121
    %v124 = vadd.f32 %v102, %v123
    %v125 = vstv %s110
    %v126 = vmul.f32 %v125, %v121
    %v127 = vadd.f32 %v105, %v126
    %vm128 = vmor %vm106, %vm116
    %v129 = vstv %s111
    %v130 = vsel %vm116, %v129, %v108
    %s131 = sld [smem:[#allocation2 + $0x3]]
    %s132 = sld [smem:[#allocation7 + $0x3]]
    %s133 = sld [smem:[#allocation8 + $0x3]]
    %s134 = smul.f32 %s133, %s132
    %v135 = vstv %s131
    %v136 = vsub.f32 %v65, %v135
    %v137 = vand.u32 2147483647, %v136
    %vm138 = vcmp.lt.f32.partialorder %v137, 1e-14
    %v139 = vsel %vm138, 1.0, %v136
    %v140 = vrcp.pop %v139
    %v141 = vmul.f32 %v139, %v140
    %v142 = vsub.f32 2.0, %v141
    %v143 = vmul.f32 %v140, %v142
    %v144 = vstv %s134
    %v145 = vmul.f32 %v144, %v143
    %v146 = vadd.f32 %v124, %v145
    %v147 = vstv %s132
    %v148 = vmul.f32 %v147, %v143
    %v149 = vadd.f32 %v127, %v148
    %vm150 = vmor %vm128, %vm138
    %v151 = vstv %s133
    %v152 = vsel %vm138, %v151, %v130
    %s153 = sld [smem:[#allocation2 + $0x4]]
    %s154 = sld [smem:[#allocation7 + $0x4]]
    %s155 = sld [smem:[#allocation8 + $0x4]]
    %s156 = smul.f32 %s155, %s154
    %v157 = vstv %s153
    %v158 = vsub.f32 %v65, %v157
    %v159 = vand.u32 2147483647, %v158
    %vm160 = vcmp.lt.f32.partialorder %v159, 1e-14
    %v161 = vsel %vm160, 1.0, %v158
    %v162 = vrcp.pop %v161
    %v163 = vmul.f32 %v161, %v162
    %v164 = vsub.f32 2.0, %v163
    %v165 = vmul.f32 %v162, %v164
    %v166 = vstv %s156
    %v167 = vmul.f32 %v166, %v165
    %v168 = vadd.f32 %v146, %v167
    %v169 = vstv %s154
    %v170 = vmul.f32 %v169, %v165
    %v171 = vadd.f32 %v149, %v170
    %vm172 = vmor %vm150, %vm160
    %v173 = vstv %s155
    %v174 = vsel %vm160, %v173, %v152
    %s175 = sld [smem:[#allocation2 + $0x5]]
    %s176 = sld [smem:[#allocation7 + $0x5]]
    %s177 = sld [smem:[#allocation8 + $0x5]]
    %s178 = smul.f32 %s177, %s176
    %v179 = vstv %s175
    %v180 = vsub.f32 %v65, %v179
    %v181 = vand.u32 2147483647, %v180
    %vm182 = vcmp.lt.f32.partialorder %v181, 1e-14
    %v183 = vsel %vm182, 1.0, %v180
    %v184 = vrcp.pop %v183
    %v185 = vmul.f32 %v183, %v184
    %v186 = vsub.f32 2.0, %v185
    %v187 = vmul.f32 %v184, %v186
    %v188 = vstv %s178
    %v189 = vmul.f32 %v188, %v187
    %v190 = vadd.f32 %v168, %v189
    %v191 = vstv %s176
    %v192 = vmul.f32 %v191, %v187
    %v193 = vadd.f32 %v171, %v192
    %vm194 = vmor %vm172, %vm182
    %v195 = vstv %s177
    %v196 = vsel %vm182, %v195, %v174
    %s197 = sld [smem:[#allocation2 + $0x6]]
    %s198 = sld [smem:[#allocation7 + $0x6]]
    %s199 = sld [smem:[#allocation8 + $0x6]]
    %s200 = smul.f32 %s199, %s198
    %v201 = vstv %s197
    %v202 = vsub.f32 %v65, %v201
    %v203 = vand.u32 2147483647, %v202
    %vm204 = vcmp.lt.f32.partialorder %v203, 1e-14
    %v205 = vsel %vm204, 1.0, %v202
    %v206 = vrcp.pop %v205
    %v207 = vmul.f32 %v205, %v206
    %v208 = vsub.f32 2.0, %v207
    %v209 = vmul.f32 %v206, %v208
    %v210 = vstv %s200
    %v211 = vmul.f32 %v210, %v209
    %v212 = vadd.f32 %v190, %v211
    %v213 = vstv %s198
    %v214 = vmul.f32 %v213, %v209
    %v215 = vadd.f32 %v193, %v214
    %vm216 = vmor %vm194, %vm204
    %v217 = vstv %s199
    %v218 = vsel %vm204, %v217, %v196
    %s219 = sld [smem:[#allocation2 + $0x7]]
    %s220 = sld [smem:[#allocation7 + $0x7]]
    %s221 = sld [smem:[#allocation8 + $0x7]]
    %s222 = smul.f32 %s221, %s220
    %v223 = vstv %s219
    %v224 = vsub.f32 %v65, %v223
    %v225 = vand.u32 2147483647, %v224
    %vm226 = vcmp.lt.f32.partialorder %v225, 1e-14
    %v227 = vsel %vm226, 1.0, %v224
    %v228 = vrcp.pop %v227
    %v229 = vmul.f32 %v227, %v228
    %v230 = vsub.f32 2.0, %v229
    %v231 = vmul.f32 %v228, %v230
    %v232 = vstv %s222
    %v233 = vmul.f32 %v232, %v231
    %v234 = vadd.f32 %v212, %v233
    %v235 = vstv %s220
    %v236 = vmul.f32 %v235, %v231
    %v237 = vadd.f32 %v215, %v236
    %vm238 = vmor %vm216, %vm226
    %v239 = vstv %s221
    %v240 = vsel %vm226, %v239, %v218
    %v241 = vrcp.pop %v237
    %v242 = vmul.f32 %v237, %v241
    %v243 = vsub.f32 2.0, %v242
    %v244 = vmul.f32 %v241, %v243
    %v245 = vmul.f32 %v234, %v244
    %v246 = vsel %vm238, %v240, %v245
    %247 = vst [vmem:[#allocation11] sm:$0xff] %v246
    // Predicated region
    $region34: #{tpu_custom_call.1} parent=1 // pred_check
      _
    $region35: #{tpu_custom_call.1} parent=1 // pred_check_branch
      %249 = sbr.rel (0) target = $region37
    $region36: #{tpu_custom_call.1} parent=1 // pred_region
      %s251 = ssub.s32 128, 128
      %252 = vsyncadd [#allocation4], %s251
      %s254 = sshll.u32 [#allocation11], 4
      %s255 = int_to_ptr.vmem [resolvable:$true] %s254
      %257 = dma.vmem_to_hbm [thread:$0]  %s255, 128, %s4, [#allocation4]
    $region37: #{tpu_custom_call.1} parent=1 // pred_fallthru
      _
    // Predicated region
    $region38: #{tpu_custom_call.1} parent=1 // pred_check
      _
    $region39: #{tpu_custom_call.1} parent=1 // pred_check_branch
      %259 = sbr.rel (0) target = $region41
    $region40: #{tpu_custom_call.1} parent=1 // pred_region
      %260 = dma.done [#allocation4], 128
    $region41: #{tpu_custom_call.1} parent=1 // pred_fallthru
      _
    %261 = vsyncpa [#allocation3], 1
    %262 = vsyncpa [#allocation4], 1
    %263 = vsyncpa [#allocation5], 1
    %264 = vsyncpa [#allocation6], 1
    %265 = vsyncpa [#allocation9], 1

</llo_original>
